<compile_context>
chip_gen: v7x
topology: tpu7x:2x2x1
jax: 0.10.0
libtpu: 0.0.40
codegen_flags: <defaults>
</compile_context>

<pallas_src>
import functools

import jax
import jax.numpy as jnp
from jax import lax
from jax.experimental import pallas as pl
from jax.experimental.pallas import tpu as pltpu


# ---------------------------------------------------------------------------
# small helpers
# ---------------------------------------------------------------------------
def _round_up(x, m):
    return (x + m - 1) // m * m


def _cdiv(a, b):
    return (a + b - 1) // b


def _device_tuning():
    """Generation-gated (tv_max, min_steps, vmem_limit_bytes)."""
    kind = ""
    try:
        dev = jax.devices()[0]
        if dev.platform == "tpu":
            kind = str(dev.device_kind).lower()
    except Exception:
        pass
    if "v6" in kind:
        # v6e: 128 MiB physical VMEM, single TC -> huge tiles, few steps needed.
        return 65536, 2, 64 * 1024 * 1024
    if "7" in kind:
        # v7x: 64 MiB physical VMEM, 2 TCs -> keep >=8 steps, 32 MiB scoped limit.
        return 32768, 8, 32 * 1024 * 1024
    # v5e / unknown / CPU-interpret default (v5e scoped default is only 16 MiB).
    return 32768, 2, 32 * 1024 * 1024


def _choose_voxel_tile(V, B, tv_max, min_steps):
    """Voxel (lane) tile: multiple of 128, as large as possible to amortize the
    ~0.35us per-grid-step overhead, keeping >= min_steps total steps, and preferring
    a tile that divides V so no pad copy is needed."""
    tv = min(tv_max, _round_up(V, 128))
    while tv > 512 and B * _cdiv(V, tv) < min_steps:
        tv = max(512, _round_up(tv // 2, 128))
    if V % tv != 0 and V % 128 == 0:
        # Look for the largest 128-multiple divisor of V that is not absurdly small.
        for cand in range(tv, 127, -128):
            if V % cand == 0:
                if cand * 4 >= tv:
                    tv = cand
                break
    return tv


# ---------------------------------------------------------------------------
# XLA glue: separable shift-and-add Sobel gradients + separable alive max-pool.
# These fuse into cheap elementwise loops in XLA (no degenerate 1-channel 3D conv,
# no reduce_window), arithmetic in f32, streamed to the kernel as bf16.
# ---------------------------------------------------------------------------
def _shift(x, axis, delta, fill=0.0):
    """out[i] = x[i + delta] along `axis`; positions outside get `fill`."""
    if delta == 0:
        return x
    n = x.shape[axis]
    pad = [(0, 0)] * x.ndim
    if delta > 0:
        pad[axis] = (0, delta)
        xp = jnp.pad(x, pad, constant_values=fill)
        return lax.slice_in_dim(xp, delta, delta + n, axis=axis)
    pad[axis] = (-delta, 0)
    xp = jnp.pad(x, pad, constant_values=fill)
    return lax.slice_in_dim(xp, 0, n, axis=axis)


def _smooth(x, axis):
    # [1, 2, 1] cross-correlation with zero padding
    return _shift(x, axis, -1) + 2.0 * x + _shift(x, axis, +1)


def _deriv(x, axis):
    # [-1, 0, 1] cross-correlation with zero padding: out[i] = x[i+1] - x[i-1]
    return _shift(x, axis, +1) - _shift(x, axis, -1)


def sobel_gradients(x, out_dtype=jnp.bfloat16):
    """x: (B, C, D, H, W) -> (B, 3C, D*H*W), channel order [gx(0..C-1), gy(...), gz(...)]."""
    B, C, D, H, W = x.shape
    xf = x.astype(jnp.float32)
    sW = _smooth(xf, 4)                        # smooth along W
    sH = _smooth(xf, 3)                        # smooth along H
    gx = _deriv(_smooth(sW, 3), 2)             # d/dD ( smooth_H smooth_W x )
    gy = _deriv(_smooth(sW, 2), 3)             # d/dH ( smooth_D smooth_W x )
    gz = _deriv(_smooth(sH, 2), 4)             # d/dW ( smooth_D smooth_H x )
    g = jnp.concatenate([gx, gy, gz], axis=1).astype(out_dtype)
    return g.reshape(B, 3 * C, D * H * W)


def get_alive_mask(x, out_dtype=jnp.bfloat16):
    """func.max_pool3d(x[:, 3:4], 3, stride=1, padding=1) > 0.1, as a bf16 0/1 stream."""
    B, _, D, H, W = x.shape
    a = x[:, 3:4].astype(jnp.float32)
    neg = float("-inf")                        # PyTorch max-pool implicit -inf padding
    for ax in (2, 3, 4):
        a = jnp.maximum(jnp.maximum(_shift(a, ax, -1, fill=neg), a),
                        _shift(a, ax, +1, fill=neg))
    return (a > 0.1).astype(out_dtype).reshape(B, 1, D * H * W)


# ---------------------------------------------------------------------------
# Pallas kernel: fused 1x1x1 conv MLP + in-kernel stochastic mask + alive mask.
# Channels on sublanes, voxels on lanes; weights resident; bf16 MXU operands,
# f32 accumulation and f32 residual/state path.
# ---------------------------------------------------------------------------
def _nca_update_kernel(seed_ref, x_ref, g_ref, alive_ref,
                       w1x_ref, w1g_ref, b1_ref, w2_ref, o_ref,
                       *, sto_threshold, update_always):
    # blocks: x (1, C, tv) f32 | g (1, 3C, tv) bf16 | alive (1, 1, tv) bf16 {0,1}
    # weights: W1x^T (Hd, C) bf16, W1g^T (Hd, 3C) bf16, b1 (Hd, 1) f32, W2^T (C, Hd) bf16
    x = x_ref[0]                                   # (C, tv)  f32 state (residual stays f32)
    g = g_ref[0]                                   # (3C, tv) bf16 Sobel gradients
    alive = alive_ref[0].astype(jnp.float32)       # (1, tv)
    tv = x.shape[-1]

    # hidden = relu(W1^T @ perception); perception split into identity + gradients
    xb = x.astype(jnp.bfloat16)
    h = jnp.dot(w1x_ref[...], xb, preferred_element_type=jnp.float32)
    h = h + jnp.dot(w1g_ref[...], g, preferred_element_type=jnp.float32)
    h = jnp.maximum(h + b1_ref[...], 0.0)                                     # (Hd, tv) f32

    upd = jnp.dot(w2_ref[...], h.astype(jnp.bfloat16),
                  preferred_element_type=jnp.float32)                         # (C, tv) f32

    if update_always:
        o_ref[0] = (x + upd) * alive
    else:
        # Stochastic per-voxel update mask: stateless splitmix32-style counter hash
        # (portable jnp uint32 ops -- works in interpret mode and on real TPUs,
        #  decorrelated across tiles because the seed+index is fully mixed).
        step = pl.program_id(0) * pl.num_programs(1) + pl.program_id(1)
        lane = lax.broadcasted_iota(jnp.int32, (1, tv), 1)
        gidx = (step * tv + lane).astype(jnp.uint32)
        z = gidx + seed_ref[0].astype(jnp.uint32) * jnp.uint32(0x9E3779B9)
        z = (z ^ (z >> 16)) * jnp.uint32(0x7FEB352D)
        z = (z ^ (z >> 15)) * jnp.uint32(0x846CA68B)
        z = z ^ (z >> 16)
        sto = (z < jnp.uint32(sto_threshold)).astype(jnp.float32)             # (1, tv)
        o_ref[0] = (x + upd * sto) * alive


def nca_update_pallas(seed, x3, g3, alive3, w1x, w1g, b1c, w2b,
                      *, update_rate, tv, vmem_limit):
    B, C, Vp = x3.shape
    C3 = g3.shape[1]
    Hd = w1x.shape[0]
    grid = (B, Vp // tv)

    update_always = float(update_rate) >= 1.0
    sto_threshold = max(0, min(int(round(float(update_rate) * 2.0 ** 32)), 2 ** 32 - 1))
    kernel = functools.partial(_nca_update_kernel,
                               sto_threshold=sto_threshold,
                               update_always=update_always)

    return pl.pallas_call(
        kernel,
        out_shape=jax.ShapeDtypeStruct((B, C, Vp), jnp.float32),
        grid=grid,
        in_specs=[
            pl.BlockSpec(memory_space=pltpu.MemorySpace.SMEM),        # seed (1,) int32
            pl.BlockSpec((1, C, tv), lambda b, i: (b, 0, i)),         # x (state, f32)
            pl.BlockSpec((1, C3, tv), lambda b, i: (b, 0, i)),        # Sobel gradients bf16
            pl.BlockSpec((1, 1, tv), lambda b, i: (b, 0, i)),         # alive mask bf16
            pl.BlockSpec((Hd, C), lambda b, i: (0, 0)),               # W1^T identity part
            pl.BlockSpec((Hd, C3), lambda b, i: (0, 0)),              # W1^T gradient part
            pl.BlockSpec((Hd, 1), lambda b, i: (0, 0)),               # b1
            pl.BlockSpec((C, Hd), lambda b, i: (0, 0)),               # W2^T
        ],
        out_specs=pl.BlockSpec((1, C, tv), lambda b, i: (b, 0, i)),
        compiler_params=pltpu.CompilerParams(
            dimension_semantics=("parallel", "parallel"),
            vmem_limit_bytes=vmem_limit),
    )(seed, x3, g3, alive3, w1x, w1g, b1c, w2b)


# ---------------------------------------------------------------------------
# Full forward (ANISOTROPIC => isotropic_type() == 0 branch of VoxelNCA.forward)
# ---------------------------------------------------------------------------
def voxel_nca_forward(x, w1, b1, w2, seed, update_rate=0.5):
    """x  : (B, C, D, H, W) float32 state (NCDHW, PyTorch convention)
       w1 : (Hd, 4C) == conv1.weight[..., 0, 0, 0]  (perception order [x, gx, gy, gz])
       b1 : (Hd,)    == conv1.bias
       w2 : (C, Hd)  == conv2.weight[..., 0, 0, 0]
       seed: int32 scalar seeding the stochastic update mask."""
    B, C, D, H, W = x.shape
    Hd = w1.shape[0]
    V = D * H * W

    alive3 = get_alive_mask(x)                  # (B, 1, V)  bf16 {0,1}
    g3 = sobel_gradients(x)                     # (B, 3C, V) bf16, channels [gx.., gy.., gz..]
    x3 = x.reshape(B, C, V).astype(jnp.float32) # free reshape, no transpose

    # weight re-layout for channels-on-sublanes / voxels-on-lanes; bf16 MXU operands
    w1x = w1[:, :C].astype(jnp.bfloat16)                 # (Hd, C)   identity columns
    w1g = w1[:, C:].astype(jnp.bfloat16)                 # (Hd, 3C)  gradient columns
    b1c = b1.reshape(Hd, 1).astype(jnp.float32)
    w2b = w2.astype(jnp.bfloat16)                        # (C, Hd)

    tv_max, min_steps, vmem_limit = _device_tuning()
    tv = _choose_voxel_tile(V, B, tv_max=tv_max, min_steps=min_steps)
    Vp = _round_up(V, tv)
    if Vp != V:
        # TODO(synk): handle the ragged last tile with an in-kernel masked store instead
        # of materializing padded copies (only hit when no 128-multiple tile divides V).
        pad = ((0, 0), (0, 0), (0, Vp - V))
        x3 = jnp.pad(x3, pad)
        g3 = jnp.pad(g3, pad)
        alive3 = jnp.pad(alive3, pad)

    seed_arr = jnp.reshape(jnp.asarray(seed, jnp.int32), (1,))

    out3 = nca_update_pallas(seed_arr, x3, g3, alive3, w1x, w1g, b1c, w2b,
                             update_rate=update_rate, tv=tv, vmem_limit=vmem_limit)
    return out3[:, :, :V].reshape(B, C, D, H, W)


# ---------------------------------------------------------------------------
# pure-jnp reference for the deterministic (update_rate=1.0) path, same bf16 casts
# ---------------------------------------------------------------------------
def _reference_forward(x, w1, b1, w2):
    B, C, D, H, W = x.shape
    V = D * H * W
    alive = get_alive_mask(x).astype(jnp.float32)
    g = sobel_gradients(x)
    x3 = x.reshape(B, C, V).astype(jnp.float32)
    xb = x3.astype(jnp.bfloat16)
    w1x = w1[:, :C].astype(jnp.bfloat16)
    w1g = w1[:, C:].astype(jnp.bfloat16)
    h = jnp.einsum('oc,bcv->bov', w1x, xb, preferred_element_type=jnp.float32)
    h = h + jnp.einsum('oc,bcv->bov', w1g, g, preferred_element_type=jnp.float32)
    h = jnp.maximum(h + b1.reshape(1, -1, 1), 0.0)
    upd = jnp.einsum('oc,bcv->bov', w2.astype(jnp.bfloat16), h.astype(jnp.bfloat16),
                     preferred_element_type=jnp.float32)
    return ((x3 + upd) * alive).reshape(B, C, D, H, W)


if __name__ == "__main__":
    # Shapes consistent with the module: channels=16, 8x8x8 volume, batch=2,
    # _hidden=32 -> hidden_channels = (32 + 31) // 32 * 32 = 32, perception = 4*C = 64.
    B, C, D, H, W = 2, 16, 8, 8, 8
    HIDDEN = 32
    P = 4 * C

    key = jax.random.PRNGKey(0)
    k_x, k_w1, k_b1, k_w2 = jax.random.split(key, 4)

    x = jax.random.normal(k_x, (B, C, D, H, W), dtype=jnp.float32)

    # conv1: P->HIDDEN with bias, conv2: HIDDEN->C without bias (PyTorch (out, in) order).
    # NOTE: the original __init__ zeros conv2 (a training init); small nonzero values
    # are used here so the matmul/update path is actually exercised.
    w1 = 0.1 * jax.random.normal(k_w1, (HIDDEN, P), dtype=jnp.float32)
    b1 = 0.1 * jax.random.normal(k_b1, (HIDDEN,), dtype=jnp.float32)
    w2 = 0.1 * jax.random.normal(k_w2, (C, HIDDEN), dtype=jnp.float32)

    # stochastic path (update_rate=0.5): shape / finiteness check
    fwd = jax.jit(functools.partial(voxel_nca_forward, update_rate=0.5))
    out = jax.block_until_ready(fwd(x, w1, b1, w2, jnp.int32(1234)))
    assert out.shape == (B, C, D, H, W)
    assert bool(jnp.all(jnp.isfinite(out)))

    # deterministic path (update_rate=1.0): compare against the pure-jnp reference
    fwd1 = jax.jit(functools.partial(voxel_nca_forward, update_rate=1.0))
    out1 = jax.block_until_ready(fwd1(x, w1, b1, w2, jnp.int32(0)))
    ref1 = _reference_forward(x, w1, b1, w2)
    max_err = float(jnp.max(jnp.abs(out1 - ref1)))
    assert max_err < 3e-2, max_err

    print("KERNEL_OK")
</pallas_src>

<mosaic_0001>
module attributes {stable_mosaic.version = 11 : i64} {
  func.func @_nca_update_kernel(%arg0: i32, %arg1: i32, %arg2: memref<1xi32, #tpu.memory_space<smem>>, %arg3: memref<1x16x512xf32, #tpu.memory_space<vmem>>, %arg4: memref<1x48x512xbf16, #tpu.memory_space<vmem>>, %arg5: memref<1x1x512xbf16, #tpu.memory_space<vmem>>, %arg6: memref<32x16xbf16, #tpu.memory_space<vmem>>, %arg7: memref<32x48xbf16, #tpu.memory_space<vmem>>, %arg8: memref<32x1xf32, #tpu.memory_space<vmem>>, %arg9: memref<16x32xbf16, #tpu.memory_space<vmem>>, %arg10: memref<1x16x512xf32, #tpu.memory_space<vmem>>) attributes {dimension_semantics = [#tpu.dimension_semantics<parallel>, #tpu.dimension_semantics<parallel>], iteration_bounds = array<i64: 2, 1>, scalar_prefetch = 0 : i64, scratch_operands = 0 : i64, tpu.core_type = #tpu.core_type<tc>, window_params = [{transform_indices = @transform_0, window_bounds = array<i64: 1>}, {transform_indices = @transform_1, window_bounds = array<i64: 1, 16, 512>}, {transform_indices = @transform_2, window_bounds = array<i64: 1, 48, 512>}, {transform_indices = @transform_3, window_bounds = array<i64: 1, 1, 512>}, {pipeline_mode = #tpu.pipeline_mode<synchronous>, transform_indices = @transform_4, window_bounds = array<i64: 32, 16>}, {pipeline_mode = #tpu.pipeline_mode<synchronous>, transform_indices = @transform_5, window_bounds = array<i64: 32, 48>}, {pipeline_mode = #tpu.pipeline_mode<synchronous>, transform_indices = @transform_6, window_bounds = array<i64: 32, 1>}, {pipeline_mode = #tpu.pipeline_mode<synchronous>, transform_indices = @transform_7, window_bounds = array<i64: 16, 32>}, {transform_indices = @transform_8, window_bounds = array<i64: 1, 16, 512>}]} {
    %c0 = arith.constant 0 : index
    %c0_0 = arith.constant 0 : index
    %c0_1 = arith.constant 0 : index
    %0 = vector.load %arg3[%c0, %c0_0, %c0_1] : memref<1x16x512xf32, #tpu.memory_space<vmem>>, vector<1x16x512xf32>
    %1 = vector.shape_cast %0 : vector<1x16x512xf32> to vector<16x512xf32>
    %c0_2 = arith.constant 0 : index
    %c0_3 = arith.constant 0 : index
    %c0_4 = arith.constant 0 : index
    %2 = vector.load %arg4[%c0_2, %c0_3, %c0_4] : memref<1x48x512xbf16, #tpu.memory_space<vmem>>, vector<1x48x512xbf16>
    %3 = vector.shape_cast %2 : vector<1x48x512xbf16> to vector<48x512xbf16>
    %c0_5 = arith.constant 0 : index
    %c0_6 = arith.constant 0 : index
    %c0_7 = arith.constant 0 : index
    %4 = vector.load %arg5[%c0_5, %c0_6, %c0_7] : memref<1x1x512xbf16, #tpu.memory_space<vmem>>, vector<1x1x512xbf16>
    %5 = vector.shape_cast %4 : vector<1x1x512xbf16> to vector<1x512xbf16>
    %6 = arith.extf %5 : vector<1x512xbf16> to vector<1x512xf32>
    %7 = arith.truncf %1 : vector<16x512xf32> to vector<16x512xbf16>
    %c0_8 = arith.constant 0 : index
    %c0_9 = arith.constant 0 : index
    %8 = vector.load %arg6[%c0_8, %c0_9] : memref<32x16xbf16, #tpu.memory_space<vmem>>, vector<32x16xbf16>
    %cst = arith.constant dense<0.000000e+00> : vector<32x512xf32>
    %9 = tpu.matmul %8, %7, %cst {dimension_numbers = #tpu.dot_dimension_numbers<[1], [0], [0], [1], [0, 0, 1, 1], [], []>} : vector<32x16xbf16>, vector<16x512xbf16>, vector<32x512xf32> -> vector<32x512xf32>
    %c0_10 = arith.constant 0 : index
    %c0_11 = arith.constant 0 : index
    %10 = vector.load %arg7[%c0_10, %c0_11] : memref<32x48xbf16, #tpu.memory_space<vmem>>, vector<32x48xbf16>
    %cst_12 = arith.constant dense<0.000000e+00> : vector<32x512xf32>
    %11 = tpu.matmul %10, %3, %cst_12 {dimension_numbers = #tpu.dot_dimension_numbers<[1], [0], [0], [1], [0, 0, 1, 1], [], []>} : vector<32x48xbf16>, vector<48x512xbf16>, vector<32x512xf32> -> vector<32x512xf32>
    %12 = arith.addf %9, %11 : vector<32x512xf32>
    %c0_13 = arith.constant 0 : index
    %c0_14 = arith.constant 0 : index
    %13 = vector.load %arg8[%c0_13, %c0_14] : memref<32x1xf32, #tpu.memory_space<vmem>>, vector<32x1xf32>
    %14 = vector.broadcast %13 : vector<32x1xf32> to vector<32x512xf32>
    %15 = arith.addf %12, %14 : vector<32x512xf32>
    %cst_15 = arith.constant 0.000000e+00 : f32
    %16 = vector.broadcast %cst_15 : f32 to vector<32x512xf32>
    %17 = arith.maximumf %15, %16 : vector<32x512xf32>
    %c0_16 = arith.constant 0 : index
    %c0_17 = arith.constant 0 : index
    %18 = vector.load %arg9[%c0_16, %c0_17] : memref<16x32xbf16, #tpu.memory_space<vmem>>, vector<16x32xbf16>
    %19 = arith.truncf %17 : vector<32x512xf32> to vector<32x512xbf16>
    %cst_18 = arith.constant dense<0.000000e+00> : vector<16x512xf32>
    %20 = tpu.matmul %18, %19, %cst_18 {dimension_numbers = #tpu.dot_dimension_numbers<[1], [0], [0], [1], [0, 0, 1, 1], [], []>} : vector<16x32xbf16>, vector<32x512xbf16>, vector<16x512xf32> -> vector<16x512xf32>
    %c1_i32 = arith.constant 1 : i32
    %21 = arith.muli %arg0, %c1_i32 : i32
    %22 = arith.addi %21, %arg1 : i32
    %23 = tpu.iota {dimensions = array<i32: 1>} : vector<1x512xi32>
    %c512_i32 = arith.constant 512 : i32
    %24 = arith.muli %22, %c512_i32 : i32
    %25 = vector.broadcast %24 : i32 to vector<1x512xi32>
    %26 = arith.addi %25, %23 : vector<1x512xi32>
    %c0_19 = arith.constant 0 : index
    %27 = memref.load %arg2[%c0_19] : memref<1xi32, #tpu.memory_space<smem>>
    %c-1640531527_i32 = arith.constant -1640531527 : i32
    %28 = arith.muli %27, %c-1640531527_i32 : i32
    %29 = vector.broadcast %28 : i32 to vector<1x512xi32>
    %30 = arith.addi %26, %29 : vector<1x512xi32>
    %c16_i32 = arith.constant 16 : i32
    %31 = vector.broadcast %c16_i32 : i32 to vector<1x512xi32>
    %32 = arith.shrui %30, %31 : vector<1x512xi32>
    %33 = arith.xori %30, %32 : vector<1x512xi32>
    %c2146121005_i32 = arith.constant 2146121005 : i32
    %34 = vector.broadcast %c2146121005_i32 : i32 to vector<1x512xi32>
    %35 = arith.muli %33, %34 : vector<1x512xi32>
    %c15_i32 = arith.constant 15 : i32
    %36 = vector.broadcast %c15_i32 : i32 to vector<1x512xi32>
    %37 = arith.shrui %35, %36 : vector<1x512xi32>
    %38 = arith.xori %35, %37 : vector<1x512xi32>
    %c-2073254261_i32 = arith.constant -2073254261 : i32
    %39 = vector.broadcast %c-2073254261_i32 : i32 to vector<1x512xi32>
    %40 = arith.muli %38, %39 : vector<1x512xi32>
    %c16_i32_20 = arith.constant 16 : i32
    %41 = vector.broadcast %c16_i32_20 : i32 to vector<1x512xi32>
    %42 = arith.shrui %40, %41 : vector<1x512xi32>
    %43 = arith.xori %40, %42 : vector<1x512xi32>
    %c-2147483648_i32 = arith.constant -2147483648 : i32
    %44 = vector.broadcast %c-2147483648_i32 : i32 to vector<1x512xi32>
    %45 = arith.cmpi ult, %43, %44 : vector<1x512xi32>
    %46 = arith.extui %45 : vector<1x512xi1> to vector<1x512xi32>
    %47 = arith.sitofp %46 : vector<1x512xi32> to vector<1x512xf32>
    %48 = vector.broadcast %47 : vector<1x512xf32> to vector<16x512xf32>
    %49 = arith.mulf %20, %48 : vector<16x512xf32>
    %50 = arith.addf %1, %49 : vector<16x512xf32>
    %51 = vector.broadcast %6 : vector<1x512xf32> to vector<16x512xf32>
    %52 = arith.mulf %50, %51 : vector<16x512xf32>
    %c0_21 = arith.constant 0 : index
    %c0_22 = arith.constant 0 : index
    %c0_23 = arith.constant 0 : index
    %53 = vector.load %arg10[%c0_21, %c0_22, %c0_23] : memref<1x16x512xf32, #tpu.memory_space<vmem>>, vector<1x16x512xf32>
    %54 = vector.shape_cast %53 : vector<1x16x512xf32> to vector<16x512xf32>
    %55 = vector.shape_cast %52 : vector<16x512xf32> to vector<1x16x512xf32>
    tpu.vector_store %arg10[%c0_21, %c0_22, %c0_23], %55 {strides = array<i32>} : memref<1x16x512xf32, #tpu.memory_space<vmem>>, vector<1x16x512xf32>,
    return
  }
  func.func @transform_0(%arg0: i32, %arg1: i32) -> i32 {
    %c0_i32 = arith.constant 0 : i32
    %c0_i32_0 = arith.constant 0 : i32
    return %c0_i32 : i32
  }
  func.func @transform_1(%arg0: i32, %arg1: i32) -> (i32, i32, i32) {
    %c0_i32 = arith.constant 0 : i32
    %c0_i32_0 = arith.constant 0 : i32
    return %arg0, %c0_i32, %arg1 : i32, i32, i32
  }
  func.func @transform_2(%arg0: i32, %arg1: i32) -> (i32, i32, i32) {
    %c0_i32 = arith.constant 0 : i32
    %c0_i32_0 = arith.constant 0 : i32
    return %arg0, %c0_i32, %arg1 : i32, i32, i32
  }
  func.func @transform_3(%arg0: i32, %arg1: i32) -> (i32, i32, i32) {
    %c0_i32 = arith.constant 0 : i32
    %c0_i32_0 = arith.constant 0 : i32
    return %arg0, %c0_i32, %arg1 : i32, i32, i32
  }
  func.func @transform_4(%arg0: i32, %arg1: i32) -> (i32, i32) {
    %c0_i32 = arith.constant 0 : i32
    %c0_i32_0 = arith.constant 0 : i32
    %c0_i32_1 = arith.constant 0 : i32
    return %c0_i32, %c0_i32_0 : i32, i32
  }
  func.func @transform_5(%arg0: i32, %arg1: i32) -> (i32, i32) {
    %c0_i32 = arith.constant 0 : i32
    %c0_i32_0 = arith.constant 0 : i32
    %c0_i32_1 = arith.constant 0 : i32
    return %c0_i32, %c0_i32_0 : i32, i32
  }
  func.func @transform_6(%arg0: i32, %arg1: i32) -> (i32, i32) {
    %c0_i32 = arith.constant 0 : i32
    %c0_i32_0 = arith.constant 0 : i32
    %c0_i32_1 = arith.constant 0 : i32
    return %c0_i32, %c0_i32_0 : i32, i32
  }
  func.func @transform_7(%arg0: i32, %arg1: i32) -> (i32, i32) {
    %c0_i32 = arith.constant 0 : i32
    %c0_i32_0 = arith.constant 0 : i32
    %c0_i32_1 = arith.constant 0 : i32
    return %c0_i32, %c0_i32_0 : i32, i32
  }
  func.func @transform_8(%arg0: i32, %arg1: i32) -> (i32, i32, i32) {
    %c0_i32 = arith.constant 0 : i32
    %c0_i32_0 = arith.constant 0 : i32
    return %arg0, %c0_i32, %arg1 : i32, i32, i32
  }
}

</mosaic_0001>

<llo_original>
// kernel: voxel_nca_forward.1
$region0: #{voxel_nca_forward.1}
  #allocation0 [shape = 'u32[]', space=smem, size = 0x4, offset = 0x4, fixed_abs, tag = 'smem constant byte address 0x4 - core index']
  #allocation1 [shape = 'u32[144,128]{1,0:T(1,128)}', space=vmem, size = 0x12000, scoped, tag = 'internal scratch']
  #allocation2 [shape = 's32[1]{0:T(128)S(6)}', space=smem, size = 0x200, scoped, tag = 'scoped memory for voxel_nca_forward.1']
  %s0 = inlined_call_operand.<no memory space> [shape: s32[1], index: 0, kind: input, shape index: {}]
  %s1 = inlined_call_operand.vmem [shape: f32[2,16,512], index: 1, kind: input, shape index: {}]
  %s2 = inlined_call_operand.vmem [shape: bf16[2,48,512], index: 2, kind: input, shape index: {}]
  %s3 = inlined_call_operand.vmem [shape: bf16[2,1,512], index: 3, kind: input, shape index: {}]
  %s4 = inlined_call_operand.vmem [shape: bf16[32,16], index: 4, kind: input, shape index: {}]
  %s5 = inlined_call_operand.vmem [shape: bf16[32,48], index: 5, kind: input, shape index: {}]
  %s6 = inlined_call_operand.vmem [shape: f32[32,1], index: 6, kind: input, shape index: {}]
  %s7 = inlined_call_operand.vmem [shape: bf16[16,32], index: 7, kind: input, shape index: {}]
  %s8 = inlined_call_operand.vmem [shape: f32[2,16,512], index: 8, kind: output, shape index: {}]
  %s9 = sld [smem:[#allocation0]]
  $region65: #{voxel_nca_forward.1} parent=0
    _
  %s11 = ssub.s32 1, %s9
  %s12 = scalar_select 0, %s11, %s9
  %13 = sst [smem:[#allocation2]] %s0
  loop: start=0, step=1, limit=4
  $region2: #{voxel_nca_forward.1} parent=0 // loop_pre_header
    _
  $region3: #{voxel_nca_forward.1} parent=0 // loop_header
    %s15 = sphi 0, %s19
    %p16 = scmp.ge.s32.totalorder %s15, 4
    %s22 = sphi 0, %s34
    %s23 = sphi 0, %s30
    %s24 = sphi 0, %s22
    %s25 = sphi 0, %s23
    %s26 = sphi 0, %s24
    %s27 = sphi 0, %s25
    %s35 = sphi 0, %s35
    %s37 = sphi 0, %s35
    %s38 = sphi 0, %s37
    %s52 = sphi 0, %s38
    %s60 = sphi 0, %s62
    %s63 = sphi 0, %s60
    %s64 = sphi 0, %s63
    %s80 = sphi 0, %s64
    %s88 = sphi 0, %s90
    %s91 = sphi 0, %s88
    %s92 = sphi 0, %s91
    %s108 = sphi 0, %s92
    %s116 = sphi 0, %s118
    %s119 = sphi 0, %s116
    %s120 = sphi 0, %s119
    %s136 = sphi 0, %s120
    %s140 = sphi 0, %s140
    %s142 = sphi 0, %s140
    %s143 = sphi 0, %s142
    %s157 = sphi 0, %s143
    %s161 = sphi 0, %s161
    %s163 = sphi 0, %s161
    %s164 = sphi 0, %s163
    %s178 = sphi 0, %s164
    %s182 = sphi 0, %s182
    %s184 = sphi 0, %s182
    %s185 = sphi 0, %s184
    %s199 = sphi 0, %s185
    %s203 = sphi 0, %s203
    %s205 = sphi 0, %s203
    %s206 = sphi 0, %s205
    %s220 = sphi 0, %s206
    %s228 = sphi 0, %s230
    %s231 = sphi 0, %s228
    %s232 = sphi 0, %s231
    %s248 = sphi 0, %s232
  $region4: #{voxel_nca_forward.1} parent=0 // loop_header_branch
    %18 = sbr.rel (%p16) target = $region8
  $region5: #{voxel_nca_forward.1} parent=0 // loop_body
    %s20 = ssub.s32 %s15, 1
    %s21 = ssub.s32 %s15, 2
    %s28 = sadd.s32 1, %s23
    %p29 = scmp.ge.s32.totalorder %s28, 1
    %s30 = scalar_select %p29, 0, %s28
    %s31 = sadd.s32 1, %s22
    %s32 = scalar_select %p29, %s31, %s22
    %p33 = scmp.ge.s32.totalorder %s32, 2
    %s34 = scalar_select %p33, 0, %s32
    %s36 = sadd.s32 %s35, 1
    %p39 = scmp.eq.s32.totalorder %s15, 1
    %p40 = scmp.ne.s32.totalorder %s35, %s37
    %p41 = scmp.eq.s32.totalorder %s15, 0
    %p42 = por %p40, %p41
    %p43 = scmp.ne.s32.totalorder %s35, %s37
    %p44 = scmp.eq.s32.totalorder %s20, 1
    %p45 = por %p43, %p44
    %p46 = scmp.ne.s32.totalorder %s37, %s38
    %p47 = scmp.eq.s32.totalorder %s20, 0
    %p48 = por %p46, %p47
    %p49 = scmp.ne.s32.totalorder %s37, %s38
    %p50 = scmp.eq.s32.totalorder %s21, 1
    %p51 = por %p49, %p50
    %p53 = scmp.ne.s32.totalorder %s38, %s52
    %p54 = scmp.eq.s32.totalorder %s21, 0
    %p55 = por %p53, %p54
    %s56 = ssub.s32 %s22, %s34
    %s57 = ssub.s32 %s23, %s30
    %s58 = sor.u32 %s56, %s57
    %p59 = scmp.eq.s32.totalorder %s58, 0
    %s61 = sadd.s32 %s60, 1
    %s62 = scalar_select %p59, %s60, %s61
    %p65 = pneg %p59
    %p66 = scmp.eq.s32.totalorder %s15, 1
    %p67 = por %p65, %p66
    %p68 = scmp.ne.s32.totalorder %s60, %s63
    %p69 = scmp.eq.s32.totalorder %s15, 0
    %p70 = por %p68, %p69
    %p71 = scmp.ne.s32.totalorder %s60, %s63
    %p72 = scmp.eq.s32.totalorder %s20, 1
    %p73 = por %p71, %p72
    %p74 = scmp.ne.s32.totalorder %s63, %s64
    %p75 = scmp.eq.s32.totalorder %s20, 0
    %p76 = por %p74, %p75
    %p77 = scmp.ne.s32.totalorder %s63, %s64
    %p78 = scmp.eq.s32.totalorder %s21, 1
    %p79 = por %p77, %p78
    %p81 = scmp.ne.s32.totalorder %s64, %s80
    %p82 = scmp.eq.s32.totalorder %s21, 0
    %p83 = por %p81, %p82
    %s84 = ssub.s32 %s22, %s34
    %s85 = ssub.s32 %s23, %s30
    %s86 = sor.u32 %s84, %s85
    %p87 = scmp.eq.s32.totalorder %s86, 0
    %s89 = sadd.s32 %s88, 1
    %s90 = scalar_select %p87, %s88, %s89
    %p93 = pneg %p87
    %p94 = scmp.eq.s32.totalorder %s15, 1
    %p95 = por %p93, %p94
    %p96 = scmp.ne.s32.totalorder %s88, %s91
    %p97 = scmp.eq.s32.totalorder %s15, 0
    %p98 = por %p96, %p97
    %p99 = scmp.ne.s32.totalorder %s88, %s91
    %p100 = scmp.eq.s32.totalorder %s20, 1
    %p101 = por %p99, %p100
    %p102 = scmp.ne.s32.totalorder %s91, %s92
    %p103 = scmp.eq.s32.totalorder %s20, 0
    %p104 = por %p102, %p103
    %p105 = scmp.ne.s32.totalorder %s91, %s92
    %p106 = scmp.eq.s32.totalorder %s21, 1
    %p107 = por %p105, %p106
    %p109 = scmp.ne.s32.totalorder %s92, %s108
    %p110 = scmp.eq.s32.totalorder %s21, 0
    %p111 = por %p109, %p110
    %s112 = ssub.s32 %s22, %s34
    %s113 = ssub.s32 %s23, %s30
    %s114 = sor.u32 %s112, %s113
    %p115 = scmp.eq.s32.totalorder %s114, 0
    %s117 = sadd.s32 %s116, 1
    %s118 = scalar_select %p115, %s116, %s117
    %p121 = pneg %p115
    %p122 = scmp.eq.s32.totalorder %s15, 1
    %p123 = por %p121, %p122
    %p124 = scmp.ne.s32.totalorder %s116, %s119
    %p125 = scmp.eq.s32.totalorder %s15, 0
    %p126 = por %p124, %p125
    %p127 = scmp.ne.s32.totalorder %s116, %s119
    %p128 = scmp.eq.s32.totalorder %s20, 1
    %p129 = por %p127, %p128
    %p130 = scmp.ne.s32.totalorder %s119, %s120
    %p131 = scmp.eq.s32.totalorder %s20, 0
    %p132 = por %p130, %p131
    %p133 = scmp.ne.s32.totalorder %s119, %s120
    %p134 = scmp.eq.s32.totalorder %s21, 1
    %p135 = por %p133, %p134
    %p137 = scmp.ne.s32.totalorder %s120, %s136
    %p138 = scmp.eq.s32.totalorder %s21, 0
    %p139 = por %p137, %p138
    %s141 = sadd.s32 %s140, 1
    %p144 = scmp.eq.s32.totalorder %s15, 1
    %p145 = scmp.ne.s32.totalorder %s140, %s142
    %p146 = scmp.eq.s32.totalorder %s15, 0
    %p147 = por %p145, %p146
    %p148 = scmp.ne.s32.totalorder %s140, %s142
    %p149 = scmp.eq.s32.totalorder %s20, 1
    %p150 = por %p148, %p149
    %p151 = scmp.ne.s32.totalorder %s142, %s143
    %p152 = scmp.eq.s32.totalorder %s20, 0
    %p153 = por %p151, %p152
    %p154 = scmp.ne.s32.totalorder %s142, %s143
    %p155 = scmp.eq.s32.totalorder %s21, 1
    %p156 = por %p154, %p155
    %p158 = scmp.ne.s32.totalorder %s143, %s157
    %p159 = scmp.eq.s32.totalorder %s21, 0
    %p160 = por %p158, %p159
    %s162 = sadd.s32 %s161, 1
    %p165 = scmp.eq.s32.totalorder %s15, 1
    %p166 = scmp.ne.s32.totalorder %s161, %s163
    %p167 = scmp.eq.s32.totalorder %s15, 0
    %p168 = por %p166, %p167
    %p169 = scmp.ne.s32.totalorder %s161, %s163
    %p170 = scmp.eq.s32.totalorder %s20, 1
    %p171 = por %p169, %p170
    %p172 = scmp.ne.s32.totalorder %s163, %s164
    %p173 = scmp.eq.s32.totalorder %s20, 0
    %p174 = por %p172, %p173
    %p175 = scmp.ne.s32.totalorder %s163, %s164
    %p176 = scmp.eq.s32.totalorder %s21, 1
    %p177 = por %p175, %p176
    %p179 = scmp.ne.s32.totalorder %s164, %s178
    %p180 = scmp.eq.s32.totalorder %s21, 0
    %p181 = por %p179, %p180
    %s183 = sadd.s32 %s182, 1
    %p186 = scmp.eq.s32.totalorder %s15, 1
    %p187 = scmp.ne.s32.totalorder %s182, %s184
    %p188 = scmp.eq.s32.totalorder %s15, 0
    %p189 = por %p187, %p188
    %p190 = scmp.ne.s32.totalorder %s182, %s184
    %p191 = scmp.eq.s32.totalorder %s20, 1
    %p192 = por %p190, %p191
    %p193 = scmp.ne.s32.totalorder %s184, %s185
    %p194 = scmp.eq.s32.totalorder %s20, 0
    %p195 = por %p193, %p194
    %p196 = scmp.ne.s32.totalorder %s184, %s185
    %p197 = scmp.eq.s32.totalorder %s21, 1
    %p198 = por %p196, %p197
    %p200 = scmp.ne.s32.totalorder %s185, %s199
    %p201 = scmp.eq.s32.totalorder %s21, 0
    %p202 = por %p200, %p201
    %s204 = sadd.s32 %s203, 1
    %p207 = scmp.eq.s32.totalorder %s15, 1
    %p208 = scmp.ne.s32.totalorder %s203, %s205
    %p209 = scmp.eq.s32.totalorder %s15, 0
    %p210 = por %p208, %p209
    %p211 = scmp.ne.s32.totalorder %s203, %s205
    %p212 = scmp.eq.s32.totalorder %s20, 1
    %p213 = por %p211, %p212
    %p214 = scmp.ne.s32.totalorder %s205, %s206
    %p215 = scmp.eq.s32.totalorder %s20, 0
    %p216 = por %p214, %p215
    %p217 = scmp.ne.s32.totalorder %s205, %s206
    %p218 = scmp.eq.s32.totalorder %s21, 1
    %p219 = por %p217, %p218
    %p221 = scmp.ne.s32.totalorder %s206, %s220
    %p222 = scmp.eq.s32.totalorder %s21, 0
    %p223 = por %p221, %p222
    %s224 = ssub.s32 %s22, %s34
    %s225 = ssub.s32 %s23, %s30
    %s226 = sor.u32 %s224, %s225
    %p227 = scmp.eq.s32.totalorder %s226, 0
    %s229 = sadd.s32 %s228, 1
    %s230 = scalar_select %p227, %s228, %s229
    %p233 = pneg %p227
    %p234 = scmp.eq.s32.totalorder %s15, 1
    %p235 = por %p233, %p234
    %p236 = scmp.ne.s32.totalorder %s228, %s231
    %p237 = scmp.eq.s32.totalorder %s15, 0
    %p238 = por %p236, %p237
    %p239 = scmp.ne.s32.totalorder %s228, %s231
    %p240 = scmp.eq.s32.totalorder %s20, 1
    %p241 = por %p239, %p240
    %p242 = scmp.ne.s32.totalorder %s231, %s232
    %p243 = scmp.eq.s32.totalorder %s20, 0
    %p244 = por %p242, %p243
    %p245 = scmp.ne.s32.totalorder %s231, %s232
    %p246 = scmp.eq.s32.totalorder %s21, 1
    %p247 = por %p245, %p246
    %p249 = scmp.ne.s32.totalorder %s232, %s248
    %p250 = scmp.eq.s32.totalorder %s21, 0
    %p251 = por %p249, %p250
    %p252 = scmp.le.s32.totalorder 1, %s15
    %p253 = scmp.lt.s32.totalorder %s15, 3
    %p254 = pnand %p252, %p253
    %p255 = pneg %p254
    // Predicated region
    $region9: #{voxel_nca_forward.1} parent=5 // pred_check
      _
    $region10: #{voxel_nca_forward.1} parent=5 // pred_check_branch
      %257 = sbr.rel (%p254) target = $region12
    $region11: #{voxel_nca_forward.1} parent=5 // pred_region
      %s258 = ssub.s32 %s15, 1
      // Predicated region
      $region13: #{voxel_nca_forward.1} parent=11 // pred_check
        %p259 = pneg %p48
      $region14: #{voxel_nca_forward.1} parent=11 // pred_check_branch
        %261 = sbr.rel (%p259) target = $region16
      $region15: #{voxel_nca_forward.1} parent=11 // pred_region
        _
      $region16: #{voxel_nca_forward.1} parent=11 // pred_fallthru
        _
      // Predicated region
      $region17: #{voxel_nca_forward.1} parent=11 // pred_check
        %p262 = pneg %p153
      $region18: #{voxel_nca_forward.1} parent=11 // pred_check_branch
        %264 = sbr.rel (%p262) target = $region20
      $region19: #{voxel_nca_forward.1} parent=11 // pred_region
        _
      $region20: #{voxel_nca_forward.1} parent=11 // pred_fallthru
        _
      // Predicated region
      $region21: #{voxel_nca_forward.1} parent=11 // pred_check
        %p265 = pneg %p174
      $region22: #{voxel_nca_forward.1} parent=11 // pred_check_branch
        %267 = sbr.rel (%p265) target = $region24
      $region23: #{voxel_nca_forward.1} parent=11 // pred_region
        _
      $region24: #{voxel_nca_forward.1} parent=11 // pred_fallthru
        _
      // Predicated region
      $region25: #{voxel_nca_forward.1} parent=11 // pred_check
        %p268 = pneg %p195
      $region26: #{voxel_nca_forward.1} parent=11 // pred_check_branch
        %270 = sbr.rel (%p268) target = $region28
      $region27: #{voxel_nca_forward.1} parent=11 // pred_region
        _
      $region28: #{voxel_nca_forward.1} parent=11 // pred_fallthru
        _
      // Predicated region
      $region29: #{voxel_nca_forward.1} parent=11 // pred_check
        %p271 = pneg %p216
      $region30: #{voxel_nca_forward.1} parent=11 // pred_check_branch
        %273 = sbr.rel (%p271) target = $region32
      $region31: #{voxel_nca_forward.1} parent=11 // pred_region
        _
      $region32: #{voxel_nca_forward.1} parent=11 // pred_fallthru
        _
    $region12: #{voxel_nca_forward.1} parent=5 // pred_fallthru
      _
    %p274 = scmp.lt.s32.totalorder %s15, 2
    // Predicated region
    $region33: #{voxel_nca_forward.1} parent=5 // pred_check
      %p275 = pneg %p274
    $region34: #{voxel_nca_forward.1} parent=5 // pred_check_branch
      %277 = sbr.rel (%p275) target = $region36
    $region35: #{voxel_nca_forward.1} parent=5 // pred_region
      // Predicated region
      $region37: #{voxel_nca_forward.1} parent=35 // pred_check
        %p278 = pneg %p70
      $region38: #{voxel_nca_forward.1} parent=35 // pred_check_branch
        %280 = sbr.rel (%p278) target = $region40
      $region39: #{voxel_nca_forward.1} parent=35 // pred_region
        %s281 = smul.u32 4, %s23
        %p282 = scmp.lt.s32.totalorder %s22, 1
        %s283 = scalar_select %p282, %s22, 1
        %p284 = scmp.lt.s32.totalorder %s281, 3
        %s285 = scalar_select %p284, %s281, 3
        %s286 = smul.addr %s283, 8
        %s287 = sadd.s32 %s285, %s286
        %s288 = smul.addr %s287, 8
        %s289 = scalar_lea.vmem %s1, %s288
        %s290 = smul.u32 4, %s23
      $region40: #{voxel_nca_forward.1} parent=35 // pred_fallthru
        _
      // Predicated region
      $region41: #{voxel_nca_forward.1} parent=35 // pred_check
        %p291 = pneg %p98
      $region42: #{voxel_nca_forward.1} parent=35 // pred_check_branch
        %293 = sbr.rel (%p291) target = $region44
      $region43: #{voxel_nca_forward.1} parent=35 // pred_region
        %s294 = smul.u32 4, %s23
        %p295 = scmp.lt.s32.totalorder %s22, 1
        %s296 = scalar_select %p295, %s22, 1
        %p297 = scmp.lt.s32.totalorder %s294, 3
        %s298 = scalar_select %p297, %s294, 3
        %s299 = smul.addr %s296, 24
        %s300 = sadd.s32 %s298, %s299
        %s301 = smul.addr %s300, 4
        %s302 = scalar_lea.vmem %s2, %s301
        %s303 = smul.u32 4, %s23
      $region44: #{voxel_nca_forward.1} parent=35 // pred_fallthru
        _
      // Predicated region
      $region45: #{voxel_nca_forward.1} parent=35 // pred_check
        %p304 = pneg %p126
      $region46: #{voxel_nca_forward.1} parent=35 // pred_check_branch
        %306 = sbr.rel (%p304) target = $region48
      $region47: #{voxel_nca_forward.1} parent=35 // pred_region
        %s307 = smul.u32 4, %s23
        %p308 = scmp.lt.s32.totalorder %s22, 1
        %s309 = scalar_select %p308, %s22, 1
        %p310 = scmp.lt.s32.totalorder %s307, 3
        %s311 = scalar_select %p310, %s307, 3
        %s312 = smul.addr %s309, 4
        %s313 = sadd.s32 %s311, %s312
        %s314 = scalar_lea.vmem %s3, %s313
        %s315 = smul.u32 4, %s23
      $region48: #{voxel_nca_forward.1} parent=35 // pred_fallthru
        _
    $region36: #{voxel_nca_forward.1} parent=5 // pred_fallthru
      _
    %p316 = scmp.le.s32.totalorder 1, %s15
    %p317 = scmp.lt.s32.totalorder %s15, 3
    %p318 = pnand %p316, %p317
    %p319 = pneg %p318
    // Predicated region
    $region49: #{voxel_nca_forward.1} parent=5 // pred_check
      _
    $region50: #{voxel_nca_forward.1} parent=5 // pred_check_branch
      %321 = sbr.rel (%p318) target = $region52
    $region51: #{voxel_nca_forward.1} parent=5 // pred_region
      %s322 = ssub.s32 %s15, 1
      %p323 = pneg %p48
      %p324 = pneg %p45
      %s325 = smul.u32 4, %s25
      %p326 = scmp.lt.s32.totalorder %s24, 1
      %s327 = scalar_select %p326, %s24, 1
      %p328 = scmp.lt.s32.totalorder %s325, 3
      %s329 = scalar_select %p328, %s325, 3
      %s330 = smul.addr %s327, 8
      %s331 = sadd.s32 %s329, %s330
      %s332 = smul.addr %s331, 8
      %s333 = scalar_lea.vmem %s1, %s332
      %p334 = pneg %p76
      %p335 = pneg %p73
      %s336 = smul.u32 4, %s25
      %p337 = scmp.lt.s32.totalorder %s24, 1
      %s338 = scalar_select %p337, %s24, 1
      %p339 = scmp.lt.s32.totalorder %s336, 3
      %s340 = scalar_select %p339, %s336, 3
      %s341 = smul.addr %s338, 24
      %s342 = sadd.s32 %s340, %s341
      %s343 = smul.addr %s342, 4
      %s344 = scalar_lea.vmem %s2, %s343
      %p345 = pneg %p104
      %p346 = pneg %p101
      %s347 = smul.u32 4, %s25
      %p348 = scmp.lt.s32.totalorder %s24, 1
      %s349 = scalar_select %p348, %s24, 1
      %p350 = scmp.lt.s32.totalorder %s347, 3
      %s351 = scalar_select %p350, %s347, 3
      %s352 = smul.addr %s349, 4
      %s353 = sadd.s32 %s351, %s352
      %s354 = scalar_lea.vmem %s3, %s353
      %p355 = pneg %p132
      %p356 = pneg %p129
      %p357 = pneg %p153
      %p358 = pneg %p150
      %p359 = pneg %p174
      %p360 = pneg %p171
      %p361 = pneg %p195
      %p362 = pneg %p192
      %p363 = pneg %p216
      %p364 = pneg %p213
      %p365 = pneg %p244
      %p366 = pneg %p241
      %s367 = smul.u32 4, %s25
      %p368 = scmp.lt.s32.totalorder %s24, 1
      %s369 = scalar_select %p368, %s24, 1
      %p370 = scmp.lt.s32.totalorder %s367, 3
      %s371 = scalar_select %p370, %s367, 3
      %s372 = smul.addr %s369, 8
      %s373 = sadd.s32 %s371, %s372
      %s374 = smul.addr %s373, 8
      %s375 = scalar_lea.vmem %s8, %s374
      %s376 = smul.u32 4, %s25
      %p377 = scmp.lt.s32.totalorder %s24, 1
      %s378 = scalar_select %p377, %s24, 1
      %p379 = scmp.lt.s32.totalorder %s376, 3
      %s380 = scalar_select %p379, %s376, 3
      %s381 = smul.addr %s378, 8
      %s382 = sadd.s32 %s380, %s381
      %s383 = smul.addr %s382, 8
      %s384 = scalar_lea.vmem %s1, %s383
      %s385 = smul.u32 4, %s25
      %s386 = smul.u32 4, %s25
      %p387 = scmp.lt.s32.totalorder %s24, 1
      %s388 = scalar_select %p387, %s24, 1
      %p389 = scmp.lt.s32.totalorder %s386, 3
      %s390 = scalar_select %p389, %s386, 3
      %s391 = smul.addr %s388, 24
      %s392 = sadd.s32 %s390, %s391
      %s393 = smul.addr %s392, 4
      %s394 = scalar_lea.vmem %s2, %s393
      %s395 = smul.u32 4, %s25
      %s396 = smul.u32 4, %s25
      %p397 = scmp.lt.s32.totalorder %s24, 1
      %s398 = scalar_select %p397, %s24, 1
      %p399 = scmp.lt.s32.totalorder %s396, 3
      %s400 = scalar_select %p399, %s396, 3
      %s401 = smul.addr %s398, 4
      %s402 = sadd.s32 %s400, %s401
      %s403 = scalar_lea.vmem %s3, %s402
      %s404 = smul.u32 4, %s25
      %s405 = smul.u32 4, %s25
      %p406 = scmp.lt.s32.totalorder %s24, 1
      %s407 = scalar_select %p406, %s24, 1
      %p408 = scmp.lt.s32.totalorder %s405, 3
      %s409 = scalar_select %p408, %s405, 3
      %s410 = smul.addr %s407, 8
      %s411 = sadd.s32 %s409, %s410
      %s412 = smul.addr %s411, 8
      %s413 = scalar_lea.vmem %s8, %s412
      %s414 = smul.u32 4, %s25
      %v416 = vld [vmem:[%s384] sm:$0xff]
      %v417 = vld [vmem:[%s384 + $0x8] sm:$0xff]
      %v418 = vld [vmem:[%s384 + $0x10] sm:$0xff]
      %v419 = vld [vmem:[%s384 + $0x18] sm:$0xff]
      %v420 = vld [vmem:[%s384 + $0x20] sm:$0xff]
      %v421 = vld [vmem:[%s384 + $0x28] sm:$0xff]
      %v422 = vld [vmem:[%s384 + $0x30] sm:$0xff]
      %v423 = vld [vmem:[%s384 + $0x38] sm:$0xff]
      %v424 = vld [vmem:[%s394] sm:$0xff]
      %v425 = vld [vmem:[%s394 + $0x8] sm:$0xff]
      %v426 = vld [vmem:[%s394 + $0x10] sm:$0xff]
      %v427 = vld [vmem:[%s394 + $0x18] sm:$0xff]
      %v428 = vld [vmem:[%s394 + $0x20] sm:$0xff]
      %v429 = vld [vmem:[%s394 + $0x28] sm:$0xff]
      %v430 = vld [vmem:[%s394 + $0x30] sm:$0xff]
      %v431 = vld [vmem:[%s394 + $0x38] sm:$0xff]
      %v432 = vld [vmem:[%s394 + $0x40] sm:$0xff]
      %v433 = vld [vmem:[%s394 + $0x48] sm:$0xff]
      %v434 = vld [vmem:[%s394 + $0x50] sm:$0xff]
      %v435 = vld [vmem:[%s394 + $0x58] sm:$0xff]
      %v436 = vld [vmem:[%s403] sm:$0xf]
      %v437 = vunpack.c.l.bf16 %v436
      %v438 = vpack.c.bf16 %v420, %v416
      %v439 = vpack.c.bf16 %v421, %v417
      %v440 = vpack.c.bf16 %v422, %v418
      %v441 = vpack.c.bf16 %v423, %v419
      %v442 = vld [vmem:[%s4] sm:$0xf]
      %v443 = vld [vmem:[%s4 + $0x4] sm:$0xf]
      %v444 = vld [vmem:[%s4 + $0x8] sm:$0xf]
      %v445 = vld [vmem:[%s4 + $0xc] sm:$0xf]
      %v446 = vld [vmem:[%s5] sm:$0xf]
      %v447 = vld [vmem:[%s5 + $0x4] sm:$0xf]
      %v448 = vld [vmem:[%s5 + $0x8] sm:$0xf]
      %v449 = vld [vmem:[%s5 + $0xc] sm:$0xf]
      %v454 = vunpack.c.l.b16 %v446
      %v455 = vunpack.c.l.b16 %v447
      %v456 = vunpack.c.l.b16 %v448
      %v457 = vunpack.c.l.b16 %v449
      %v458 = vpack.c.b16 %v455, %v454
      %v459 = vpack.c.b16 %v457, %v456
      %v472 = vunpack.c.l.b16 %v424
      %v473 = vunpack.c.h.b16 %v424
      %v474 = vunpack.c.l.b16 %v425
      %v475 = vunpack.c.h.b16 %v425
      %v476 = vunpack.c.l.b16 %v426
      %v477 = vunpack.c.h.b16 %v426
      %v478 = vunpack.c.l.b16 %v427
      %v479 = vunpack.c.h.b16 %v427
      %v480 = vunpack.c.l.b16 %v428
      %v481 = vunpack.c.h.b16 %v428
      %v482 = vunpack.c.l.b16 %v429
      %v483 = vunpack.c.h.b16 %v429
      %v484 = vunpack.c.l.b16 %v430
      %v485 = vunpack.c.h.b16 %v430
      %v486 = vunpack.c.l.b16 %v431
      %v487 = vunpack.c.h.b16 %v431
      %v488 = vunpack.c.l.b16 %v432
      %v489 = vunpack.c.h.b16 %v432
      %v490 = vunpack.c.l.b16 %v433
      %v491 = vunpack.c.h.b16 %v433
      %v492 = vunpack.c.l.b16 %v434
      %v493 = vunpack.c.h.b16 %v434
      %v494 = vunpack.c.l.b16 %v435
      %v495 = vunpack.c.h.b16 %v435
      %v496 = vpack.c.b16 %v476, %v472
      %v497 = vpack.c.b16 %v477, %v473
      %v498 = vpack.c.b16 %v478, %v474
      %v499 = vpack.c.b16 %v479, %v475
      %v500 = vpack.c.b16 %v484, %v480
      %v501 = vpack.c.b16 %v485, %v481
      %v502 = vpack.c.b16 %v486, %v482
      %v503 = vpack.c.b16 %v487, %v483
      %v504 = vpack.c.b16 %v492, %v488
      %v505 = vpack.c.b16 %v493, %v489
      %v506 = vpack.c.b16 %v494, %v490
      %v507 = vpack.c.b16 %v495, %v491
      %vm520 = vcmask 392192
      %v522 = vsel %vm520, %v458, 0
      %v525 = vsel %vm520, %v459, 0
      %527 = vmatprep.subr.bf16.mxu0 %v497
      %528 = vmatpush1.bf16.msra.mxu0 %v496
      %529 = vmatprep.subr.bf16.mxu0 %v501
      %530 = vmatpush1.bf16.msra.mxu0 %v500
      %531 = vmatprep.subr.bf16.mxu0 %v505
      %532 = vmatpush1.bf16.msra.mxu0 %v504
      %533 = vmatprep.subr.bf16.mxu0 0
      %534 = vmatpush1.bf16.msra.mxu0 0
      %535 = vmatprep.subr.bf16.mxu0 0
      %536 = vmatpush1.bf16.msra.mxu0 0
      %537 = vmatprep.subr.bf16.mxu0 0
      %538 = vmatpush1.bf16.msra.mxu0 0
      %539 = vmatprep.subr.bf16.mxu0 0
      %540 = vmatpush1.bf16.msra.mxu0 0
      %541 = vmatprep.subr.bf16.mxu0 0
      %542 = vmatpush1.bf16.msra.mxu0 0
      %543 = vmatprep.subr.bf16.mxu0 0
      %544 = vmatpush1.bf16.msra.mxu0 0
      %545 = vmatprep.subr.bf16.mxu0 0
      %546 = vmatpush1.bf16.msra.mxu0 0
      %547 = vmatprep.subr.bf16.mxu0 0
      %548 = vmatpush1.bf16.msra.mxu0 0
      %549 = vmatprep.subr.bf16.mxu0 0
      %550 = vmatpush1.bf16.msra.mxu0 0
      %551 = vmatprep.subr.bf16.mxu0 0
      %552 = vmatpush1.bf16.msra.mxu0 0
      %553 = vmatprep.subr.bf16.mxu0 0
      %554 = vmatpush1.bf16.msra.mxu0 0
      %555 = vmatprep.subr.bf16.mxu0 0
      %556 = vmatpush1.bf16.msra.mxu0 0
      %557 = vmatprep.subr.bf16.mxu0 0
      %558 = vmatpush1.bf16.msra.mxu0 0
      %559 = vmatprep.mubr.bf16.mxu0 0
      %560 = vmatmul.mubr.bf16.gmra.mrb[0].mxu0 %v522
      %v561 = vpop.f32.mrb[0].mxu0
      %v562 = vadd.f32 0.0, %v561
      %v563 = vpop.f32.mrb[0].mxu0
      %v564 = vadd.f32 0.0, %v563
      %v565 = vpop.f32.mrb[0].mxu0
      %v566 = vadd.f32 0.0, %v565
      %v567 = vpop.f32.mrb[0].mxu0
      %v568 = vadd.f32 0.0, %v567
      %569 = vmatprep.mubr.bf16.mxu0 0
      %570 = vmatmul.mubr.bf16.gmra.mrb[0].mxu0 %v525
      %v571 = vpop.f32.mrb[0].mxu0
      %v572 = vadd.f32 0.0, %v571
      %v573 = vpop.f32.mrb[0].mxu0
      %v574 = vadd.f32 0.0, %v573
      %v575 = vpop.f32.mrb[0].mxu0
      %v576 = vadd.f32 0.0, %v575
      %v577 = vpop.f32.mrb[0].mxu0
      %v578 = vadd.f32 0.0, %v577
      %579 = vdwg.mxu0
      %580 = vmatprep.subr.bf16.mxu0 %v499
      %581 = vmatpush1.bf16.msra.mxu0 %v498
      %582 = vmatprep.subr.bf16.mxu0 %v503
      %583 = vmatpush1.bf16.msra.mxu0 %v502
      %584 = vmatprep.subr.bf16.mxu0 %v507
      %585 = vmatpush1.bf16.msra.mxu0 %v506
      %586 = vmatprep.subr.bf16.mxu0 0
      %587 = vmatpush1.bf16.msra.mxu0 0
      %588 = vmatprep.subr.bf16.mxu0 0
      %589 = vmatpush1.bf16.msra.mxu0 0
      %590 = vmatprep.subr.bf16.mxu0 0
      %591 = vmatpush1.bf16.msra.mxu0 0
      %592 = vmatprep.subr.bf16.mxu0 0
      %593 = vmatpush1.bf16.msra.mxu0 0
      %594 = vmatprep.subr.bf16.mxu0 0
      %595 = vmatpush1.bf16.msra.mxu0 0
      %596 = vmatprep.subr.bf16.mxu0 0
      %597 = vmatpush1.bf16.msra.mxu0 0
      %598 = vmatprep.subr.bf16.mxu0 0
      %599 = vmatpush1.bf16.msra.mxu0 0
      %600 = vmatprep.subr.bf16.mxu0 0
      %601 = vmatpush1.bf16.msra.mxu0 0
      %602 = vmatprep.subr.bf16.mxu0 0
      %603 = vmatpush1.bf16.msra.mxu0 0
      %604 = vmatprep.subr.bf16.mxu0 0
      %605 = vmatpush1.bf16.msra.mxu0 0
      %606 = vmatprep.subr.bf16.mxu0 0
      %607 = vmatpush1.bf16.msra.mxu0 0
      %608 = vmatprep.subr.bf16.mxu0 0
      %609 = vmatpush1.bf16.msra.mxu0 0
      %610 = vmatprep.subr.bf16.mxu0 0
      %611 = vmatpush1.bf16.msra.mxu0 0
      %612 = vmatprep.mubr.bf16.mxu0 0
      %613 = vmatmul.mubr.bf16.gmra.mrb[0].mxu0 %v522
      %v614 = vpop.f32.mrb[0].mxu0
      %v615 = vadd.f32 0.0, %v614
      %v616 = vpop.f32.mrb[0].mxu0
      %v617 = vadd.f32 0.0, %v616
      %v618 = vpop.f32.mrb[0].mxu0
      %v619 = vadd.f32 0.0, %v618
      %v620 = vpop.f32.mrb[0].mxu0
      %v621 = vadd.f32 0.0, %v620
      %622 = vmatprep.mubr.bf16.mxu0 0
      %623 = vmatmul.mubr.bf16.gmra.mrb[0].mxu0 %v525
      %v624 = vpop.f32.mrb[0].mxu0
      %v625 = vadd.f32 0.0, %v624
      %v626 = vpop.f32.mrb[0].mxu0
      %v627 = vadd.f32 0.0, %v626
      %v628 = vpop.f32.mrb[0].mxu0
      %v629 = vadd.f32 0.0, %v628
      %v630 = vpop.f32.mrb[0].mxu0
      %v631 = vadd.f32 0.0, %v630
      %632 = vdwg.mxu0
      %v637 = vunpack.c.l.b16 %v442
      %v638 = vunpack.c.l.b16 %v443
      %v639 = vunpack.c.l.b16 %v444
      %v640 = vunpack.c.l.b16 %v445
      %v641 = vpack.c.b16 %v638, %v637
      %v642 = vpack.c.b16 %v640, %v639
      %vm643 = vcmask 130048
      %v645 = vsel %vm643, %v641, 0
      %v648 = vsel %vm643, %v642, 0
      %650 = vmatprep.subr.bf16.mxu0 %v439
      %651 = vmatpush1.bf16.msra.mxu0 %v438
      %652 = vmatprep.subr.bf16.mxu0 0
      %653 = vmatpush1.bf16.msra.mxu0 0
      %654 = vmatprep.subr.bf16.mxu0 0
      %655 = vmatpush1.bf16.msra.mxu0 0
      %656 = vmatprep.subr.bf16.mxu0 0
      %657 = vmatpush1.bf16.msra.mxu0 0
      %658 = vmatprep.subr.bf16.mxu0 0
      %659 = vmatpush1.bf16.msra.mxu0 0
      %660 = vmatprep.subr.bf16.mxu0 0
      %661 = vmatpush1.bf16.msra.mxu0 0
      %662 = vmatprep.subr.bf16.mxu0 0
      %663 = vmatpush1.bf16.msra.mxu0 0
      %664 = vmatprep.subr.bf16.mxu0 0
      %665 = vmatpush1.bf16.msra.mxu0 0
      %666 = vmatprep.subr.bf16.mxu0 0
      %667 = vmatpush1.bf16.msra.mxu0 0
      %668 = vmatprep.subr.bf16.mxu0 0
      %669 = vmatpush1.bf16.msra.mxu0 0
      %670 = vmatprep.subr.bf16.mxu0 0
      %671 = vmatpush1.bf16.msra.mxu0 0
      %672 = vmatprep.subr.bf16.mxu0 0
      %673 = vmatpush1.bf16.msra.mxu0 0
      %674 = vmatprep.subr.bf16.mxu0 0
      %675 = vmatpush1.bf16.msra.mxu0 0
      %676 = vmatprep.subr.bf16.mxu0 0
      %677 = vmatpush1.bf16.msra.mxu0 0
      %678 = vmatprep.subr.bf16.mxu0 0
      %679 = vmatpush1.bf16.msra.mxu0 0
      %680 = vmatprep.subr.bf16.mxu0 0
      %681 = vmatpush1.bf16.msra.mxu0 0
      %682 = vmatprep.mubr.bf16.mxu0 0
      %683 = vmatmul.mubr.bf16.gmra.mrb[0].mxu0 %v645
      %v684 = vpop.f32.mrb[0].mxu0
      %v685 = vadd.f32 %v562, %v684
      %v686 = vpop.f32.mrb[0].mxu0
      %v687 = vadd.f32 %v564, %v686
      %v688 = vpop.f32.mrb[0].mxu0
      %v689 = vadd.f32 %v566, %v688
      %v690 = vpop.f32.mrb[0].mxu0
      %v691 = vadd.f32 %v568, %v690
      %692 = vmatprep.mubr.bf16.mxu0 0
      %693 = vmatmul.mubr.bf16.gmra.mrb[0].mxu0 %v648
      %v694 = vpop.f32.mrb[0].mxu0
      %v695 = vadd.f32 %v572, %v694
      %v696 = vpop.f32.mrb[0].mxu0
      %v697 = vadd.f32 %v574, %v696
      %v698 = vpop.f32.mrb[0].mxu0
      %v699 = vadd.f32 %v576, %v698
      %v700 = vpop.f32.mrb[0].mxu0
      %v701 = vadd.f32 %v578, %v700
      %702 = vdwg.mxu0
      %703 = vmatprep.subr.bf16.mxu0 %v441
      %704 = vmatpush1.bf16.msra.mxu0 %v440
      %705 = vmatprep.subr.bf16.mxu0 0
      %706 = vmatpush1.bf16.msra.mxu0 0
      %707 = vmatprep.subr.bf16.mxu0 0
      %708 = vmatpush1.bf16.msra.mxu0 0
      %709 = vmatprep.subr.bf16.mxu0 0
      %710 = vmatpush1.bf16.msra.mxu0 0
      %711 = vmatprep.subr.bf16.mxu0 0
      %712 = vmatpush1.bf16.msra.mxu0 0
      %713 = vmatprep.subr.bf16.mxu0 0
      %714 = vmatpush1.bf16.msra.mxu0 0
      %715 = vmatprep.subr.bf16.mxu0 0
      %716 = vmatpush1.bf16.msra.mxu0 0
      %717 = vmatprep.subr.bf16.mxu0 0
      %718 = vmatpush1.bf16.msra.mxu0 0
      %719 = vmatprep.subr.bf16.mxu0 0
      %720 = vmatpush1.bf16.msra.mxu0 0
      %721 = vmatprep.subr.bf16.mxu0 0
      %722 = vmatpush1.bf16.msra.mxu0 0
      %723 = vmatprep.subr.bf16.mxu0 0
      %724 = vmatpush1.bf16.msra.mxu0 0
      %725 = vmatprep.subr.bf16.mxu0 0
      %726 = vmatpush1.bf16.msra.mxu0 0
      %727 = vmatprep.subr.bf16.mxu0 0
      %728 = vmatpush1.bf16.msra.mxu0 0
      %729 = vmatprep.subr.bf16.mxu0 0
      %730 = vmatpush1.bf16.msra.mxu0 0
      %731 = vmatprep.subr.bf16.mxu0 0
      %732 = vmatpush1.bf16.msra.mxu0 0
      %733 = vmatprep.subr.bf16.mxu0 0
      %734 = vmatpush1.bf16.msra.mxu0 0
      %735 = vmatprep.mubr.bf16.mxu0 0
      %736 = vmatmul.mubr.bf16.gmra.mrb[0].mxu0 %v645
      %v737 = vpop.f32.mrb[0].mxu0
      %v738 = vadd.f32 %v615, %v737
      %v739 = vpop.f32.mrb[0].mxu0
      %v740 = vadd.f32 %v617, %v739
      %v741 = vpop.f32.mrb[0].mxu0
      %v742 = vadd.f32 %v619, %v741
      %v743 = vpop.f32.mrb[0].mxu0
      %v744 = vadd.f32 %v621, %v743
      %745 = vmatprep.mubr.bf16.mxu0 0
      %746 = vmatmul.mubr.bf16.gmra.mrb[0].mxu0 %v648
      %v747 = vpop.f32.mrb[0].mxu0
      %v748 = vadd.f32 %v625, %v747
      %v749 = vpop.f32.mrb[0].mxu0
      %v750 = vadd.f32 %v627, %v749
      %v751 = vpop.f32.mrb[0].mxu0
      %v752 = vadd.f32 %v629, %v751
      %v753 = vpop.f32.mrb[0].mxu0
      %v754 = vadd.f32 %v631, %v753
      %755 = vdwg.mxu0
      %v756 = vld [vmem:[%s6] sm:$0xff]
      %v757 = vld [vmem:[%s6 + $0x8] sm:$0xff]
      %v758 = vld [vmem:[%s6 + $0x10] sm:$0xff]
      %v759 = vld [vmem:[%s6 + $0x18] sm:$0xff]
      %761 = vset.pattern.permute.xlu0 0
      %762 = vperm.xlu0 %761, %v756
      %v763 = vpop.permute.xlu0 %762
      %766 = vset.pattern.permute.xlu0 0
      %767 = vperm.xlu0 %766, %v757
      %v768 = vpop.permute.xlu0 %767
      %771 = vset.pattern.permute.xlu0 0
      %772 = vperm.xlu0 %771, %v758
      %v773 = vpop.permute.xlu0 %772
      %776 = vset.pattern.permute.xlu0 0
      %777 = vperm.xlu0 %776, %v759
      %v778 = vpop.permute.xlu0 %777
      %v780 = vadd.f32 %v685, %v763
      %v781 = vadd.f32 %v687, %v763
      %v782 = vadd.f32 %v738, %v763
      %v783 = vadd.f32 %v740, %v763
      %v784 = vadd.f32 %v689, %v768
      %v785 = vadd.f32 %v691, %v768
      %v786 = vadd.f32 %v742, %v768
      %v787 = vadd.f32 %v744, %v768
      %v788 = vadd.f32 %v695, %v773
      %v789 = vadd.f32 %v697, %v773
      %v790 = vadd.f32 %v748, %v773
      %v791 = vadd.f32 %v750, %v773
      %v792 = vadd.f32 %v699, %v778
      %v793 = vadd.f32 %v701, %v778
      %v794 = vadd.f32 %v752, %v778
      %v795 = vadd.f32 %v754, %v778
      %v796 = vmax.f32 %v780, 0.0
      %v797 = vmax.f32 %v781, 0.0
      %v798 = vmax.f32 %v782, 0.0
      %v799 = vmax.f32 %v783, 0.0
      %v800 = vmax.f32 %v784, 0.0
      %v801 = vmax.f32 %v785, 0.0
      %v802 = vmax.f32 %v786, 0.0
      %v803 = vmax.f32 %v787, 0.0
      %v804 = vmax.f32 %v788, 0.0
      %v805 = vmax.f32 %v789, 0.0
      %v806 = vmax.f32 %v790, 0.0
      %v807 = vmax.f32 %v791, 0.0
      %v808 = vmax.f32 %v792, 0.0
      %v809 = vmax.f32 %v793, 0.0
      %v810 = vmax.f32 %v794, 0.0
      %v811 = vmax.f32 %v795, 0.0
      %v812 = vld [vmem:[%s7] sm:$0xf]
      %v813 = vld [vmem:[%s7 + $0x4] sm:$0xf]
      %v814 = vpack.c.bf16 %v800, %v796
      %v815 = vpack.c.bf16 %v801, %v797
      %v816 = vpack.c.bf16 %v802, %v798
      %v817 = vpack.c.bf16 %v803, %v799
      %v818 = vpack.c.bf16 %v808, %v804
      %v819 = vpack.c.bf16 %v809, %v805
      %v820 = vpack.c.bf16 %v810, %v806
      %v821 = vpack.c.bf16 %v811, %v807
      %v824 = vunpack.c.l.b16 %v812
      %v825 = vunpack.c.l.b16 %v813
      %v826 = vpack.c.b16 %v825, %v824
      %vm827 = vcmask 261120
      %v829 = vsel %vm827, %v826, 0
      %831 = vmatprep.subr.bf16.mxu0 %v815
      %832 = vmatpush1.bf16.msra.mxu0 %v814
      %833 = vmatprep.subr.bf16.mxu0 %v819
      %834 = vmatpush1.bf16.msra.mxu0 %v818
      %835 = vmatprep.subr.bf16.mxu0 0
      %836 = vmatpush1.bf16.msra.mxu0 0
      %837 = vmatprep.subr.bf16.mxu0 0
      %838 = vmatpush1.bf16.msra.mxu0 0
      %839 = vmatprep.subr.bf16.mxu0 0
      %840 = vmatpush1.bf16.msra.mxu0 0
      %841 = vmatprep.subr.bf16.mxu0 0
      %842 = vmatpush1.bf16.msra.mxu0 0
      %843 = vmatprep.subr.bf16.mxu0 0
      %844 = vmatpush1.bf16.msra.mxu0 0
      %845 = vmatprep.subr.bf16.mxu0 0
      %846 = vmatpush1.bf16.msra.mxu0 0
      %847 = vmatprep.subr.bf16.mxu0 0
      %848 = vmatpush1.bf16.msra.mxu0 0
      %849 = vmatprep.subr.bf16.mxu0 0
      %850 = vmatpush1.bf16.msra.mxu0 0
      %851 = vmatprep.subr.bf16.mxu0 0
      %852 = vmatpush1.bf16.msra.mxu0 0
      %853 = vmatprep.subr.bf16.mxu0 0
      %854 = vmatpush1.bf16.msra.mxu0 0
      %855 = vmatprep.subr.bf16.mxu0 0
      %856 = vmatpush1.bf16.msra.mxu0 0
      %857 = vmatprep.subr.bf16.mxu0 0
      %858 = vmatpush1.bf16.msra.mxu0 0
      %859 = vmatprep.subr.bf16.mxu0 0
      %860 = vmatpush1.bf16.msra.mxu0 0
      %861 = vmatprep.subr.bf16.mxu0 0
      %862 = vmatpush1.bf16.msra.mxu0 0
      %863 = vmatprep.mubr.bf16.mxu0 0
      %864 = vmatmul.mubr.bf16.gmra.mrb[0].mxu0 %v829
      %v865 = vpop.f32.mrb[0].mxu0
      %v866 = vadd.f32 0.0, %v865
      %v867 = vpop.f32.mrb[0].mxu0
      %v868 = vadd.f32 0.0, %v867
      %v869 = vpop.f32.mrb[0].mxu0
      %v870 = vadd.f32 0.0, %v869
      %v871 = vpop.f32.mrb[0].mxu0
      %v872 = vadd.f32 0.0, %v871
      %873 = vdwg.mxu0
      %874 = vmatprep.subr.bf16.mxu0 %v817
      %875 = vmatpush1.bf16.msra.mxu0 %v816
      %876 = vmatprep.subr.bf16.mxu0 %v821
      %877 = vmatpush1.bf16.msra.mxu0 %v820
      %878 = vmatprep.subr.bf16.mxu0 0
      %879 = vmatpush1.bf16.msra.mxu0 0
      %880 = vmatprep.subr.bf16.mxu0 0
      %881 = vmatpush1.bf16.msra.mxu0 0
      %882 = vmatprep.subr.bf16.mxu0 0
      %883 = vmatpush1.bf16.msra.mxu0 0
      %884 = vmatprep.subr.bf16.mxu0 0
      %885 = vmatpush1.bf16.msra.mxu0 0
      %886 = vmatprep.subr.bf16.mxu0 0
      %887 = vmatpush1.bf16.msra.mxu0 0
      %888 = vmatprep.subr.bf16.mxu0 0
      %889 = vmatpush1.bf16.msra.mxu0 0
      %890 = vmatprep.subr.bf16.mxu0 0
      %891 = vmatpush1.bf16.msra.mxu0 0
      %892 = vmatprep.subr.bf16.mxu0 0
      %893 = vmatpush1.bf16.msra.mxu0 0
      %894 = vmatprep.subr.bf16.mxu0 0
      %895 = vmatpush1.bf16.msra.mxu0 0
      %896 = vmatprep.subr.bf16.mxu0 0
      %897 = vmatpush1.bf16.msra.mxu0 0
      %898 = vmatprep.subr.bf16.mxu0 0
      %899 = vmatpush1.bf16.msra.mxu0 0
      %900 = vmatprep.subr.bf16.mxu0 0
      %901 = vmatpush1.bf16.msra.mxu0 0
      %902 = vmatprep.subr.bf16.mxu0 0
      %903 = vmatpush1.bf16.msra.mxu0 0
      %904 = vmatprep.subr.bf16.mxu0 0
      %905 = vmatpush1.bf16.msra.mxu0 0
      %906 = vmatprep.mubr.bf16.mxu0 0
      %907 = vmatmul.mubr.bf16.gmra.mrb[0].mxu0 %v829
      %v908 = vpop.f32.mrb[0].mxu0
      %v909 = vadd.f32 0.0, %v908
      %v910 = vpop.f32.mrb[0].mxu0
      %v911 = vadd.f32 0.0, %v910
      %v912 = vpop.f32.mrb[0].mxu0
      %v913 = vadd.f32 0.0, %v912
      %v914 = vpop.f32.mrb[0].mxu0
      %v915 = vadd.f32 0.0, %v914
      %916 = vdwg.mxu0
      %s917 = sadd.s32 %s24, %s25
      %v918 = vlaneseq
      %v919 = vand.u32 %v918, 127
      %v920 = vadd.s32 %v919, 128
      %v921 = vadd.s32 %v919, 256
      %v922 = vadd.s32 %v919, 384
      %s923 = smul.u32 %s917, 512
      %v924 = vstv %s923
      %v925 = vadd.s32 %v924, %v919
      %v926 = vadd.s32 %v924, %v920
      %v927 = vadd.s32 %v924, %v921
      %v928 = vadd.s32 %v924, %v922
      %s929 = sld [smem:[#allocation2]]
      %s930 = smul.u32 %s929, 2654435769
      %v931 = vstv %s930
      %v932 = vadd.s32 %v925, %v931
      %v933 = vadd.s32 %v926, %v931
      %v934 = vadd.s32 %v927, %v931
      %v935 = vadd.s32 %v928, %v931
      %v936 = vshrl.u32 %v932, 16
      %v937 = vshrl.u32 %v933, 16
      %v938 = vshrl.u32 %v934, 16
      %v939 = vshrl.u32 %v935, 16
      %v940 = vxor.u32 %v932, %v936
      %v941 = vxor.u32 %v933, %v937
      %v942 = vxor.u32 %v934, %v938
      %v943 = vxor.u32 %v935, %v939
      %v944 = vmul.u32 %v940, 2146121005
      %v945 = vmul.u32 %v941, 2146121005
      %v946 = vmul.u32 %v942, 2146121005
      %v947 = vmul.u32 %v943, 2146121005
      %v948 = vshrl.u32 %v944, 15
      %v949 = vshrl.u32 %v945, 15
      %v950 = vshrl.u32 %v946, 15
      %v951 = vshrl.u32 %v947, 15
      %v952 = vxor.u32 %v944, %v948
      %v953 = vxor.u32 %v945, %v949
      %v954 = vxor.u32 %v946, %v950
      %v955 = vxor.u32 %v947, %v951
      %v956 = vmul.u32 %v952, 2221713035
      %v957 = vmul.u32 %v953, 2221713035
      %v958 = vmul.u32 %v954, 2221713035
      %v959 = vmul.u32 %v955, 2221713035
      %v960 = vshrl.u32 %v956, 16
      %v961 = vshrl.u32 %v957, 16
      %v962 = vshrl.u32 %v958, 16
      %v963 = vshrl.u32 %v959, 16
      %v964 = vxor.u32 %v956, %v960
      %v965 = vxor.u32 %v957, %v961
      %v966 = vxor.u32 %v958, %v962
      %v967 = vxor.u32 %v959, %v963
      %vm968 = vcmp.lt.u32.totalorder %v964, 2147483648
      %vm969 = vcmp.lt.u32.totalorder %v965, 2147483648
      %vm970 = vcmp.lt.u32.totalorder %v966, 2147483648
      %vm971 = vcmp.lt.u32.totalorder %v967, 2147483648
      %v972 = vsel %vm968, 1, 0
      %v973 = vsel %vm969, 1, 0
      %v974 = vsel %vm970, 1, 0
      %v975 = vsel %vm971, 1, 0
      %v976 = vcvt.s32.f32 %v972
      %v977 = vcvt.s32.f32 %v973
      %v978 = vcvt.s32.f32 %v974
      %v979 = vcvt.s32.f32 %v975
      %v980 = vmul.f32 %v866, %v976
      %v981 = vmul.f32 %v868, %v977
      %v982 = vmul.f32 %v909, %v978
      %v983 = vmul.f32 %v911, %v979
      %v984 = vmul.f32 %v870, %v976
      %v985 = vmul.f32 %v872, %v977
      %v986 = vmul.f32 %v913, %v978
      %v987 = vmul.f32 %v915, %v979
      %v988 = vadd.f32 %v416, %v980
      %v989 = vadd.f32 %v417, %v981
      %v990 = vadd.f32 %v418, %v982
      %v991 = vadd.f32 %v419, %v983
      %v992 = vadd.f32 %v420, %v984
      %v993 = vadd.f32 %v421, %v985
      %v994 = vadd.f32 %v422, %v986
      %v995 = vadd.f32 %v423, %v987
      %v997 = vlaneseq
      %v998 = vshrl.u32 %v997, 7
      %v999 = vsub.s32 0, %v998
      %v1000 = vrot.slane %v437, %v999
      %v1001 = vlaneseq
      %v1002 = vshrl.u32 %v1001, 7
      %v1003 = vsub.s32 2, %v1002
      %v1004 = vrot.slane %v437, %v1003
      %v1005 = vlaneseq
      %v1006 = vshrl.u32 %v1005, 7
      %v1007 = vsub.s32 4, %v1006
      %v1008 = vrot.slane %v437, %v1007
      %v1009 = vlaneseq
      %v1010 = vshrl.u32 %v1009, 7
      %v1011 = vsub.s32 6, %v1010
      %v1012 = vrot.slane %v437, %v1011
      %v1017 = vlaneseq
      %v1018 = vshrl.u32 %v1017, 7
      %v1019 = vsub.s32 0, %v1018
      %v1020 = vrot.slane %v1000, %v1019
      %v1021 = vlaneseq
      %v1022 = vshrl.u32 %v1021, 7
      %v1023 = vsub.s32 0, %v1022
      %v1024 = vrot.slane %v1004, %v1023
      %v1025 = vlaneseq
      %v1026 = vshrl.u32 %v1025, 7
      %v1027 = vsub.s32 0, %v1026
      %v1028 = vrot.slane %v1008, %v1027
      %v1029 = vlaneseq
      %v1030 = vshrl.u32 %v1029, 7
      %v1031 = vsub.s32 0, %v1030
      %v1032 = vrot.slane %v1012, %v1031
      %v1033 = vmul.f32 %v988, %v1020
      %v1034 = vmul.f32 %v989, %v1024
      %v1035 = vmul.f32 %v990, %v1028
      %v1036 = vmul.f32 %v991, %v1032
      %v1037 = vmul.f32 %v992, %v1020
      %v1038 = vmul.f32 %v993, %v1024
      %v1039 = vmul.f32 %v994, %v1028
      %v1040 = vmul.f32 %v995, %v1032
      %1041 = vst [vmem:[%s413] sm:$0xff] %v1033
      %1042 = vst [vmem:[%s413 + $0x8] sm:$0xff] %v1034
      %1043 = vst [vmem:[%s413 + $0x10] sm:$0xff] %v1035
      %1044 = vst [vmem:[%s413 + $0x18] sm:$0xff] %v1036
      %1045 = vst [vmem:[%s413 + $0x20] sm:$0xff] %v1037
      %1046 = vst [vmem:[%s413 + $0x28] sm:$0xff] %v1038
      %1047 = vst [vmem:[%s413 + $0x30] sm:$0xff] %v1039
      %1048 = vst [vmem:[%s413 + $0x38] sm:$0xff] %v1040
      %s1049 = smul.u32 4, %s25
      %p1050 = scmp.lt.s32.totalorder %s24, 1
      %s1051 = scalar_select %p1050, %s24, 1
      %p1052 = scmp.lt.s32.totalorder %s1049, 3
      %s1053 = scalar_select %p1052, %s1049, 3
      %s1054 = smul.addr %s1051, 8
      %s1055 = sadd.s32 %s1053, %s1054
      %s1056 = smul.addr %s1055, 8
      %s1057 = scalar_lea.vmem %s8, %s1056
      // Predicated region
      $region53: #{voxel_nca_forward.1} parent=51 // pred_check
        %p1058 = pneg %p241
      $region54: #{voxel_nca_forward.1} parent=51 // pred_check_branch
        %1060 = sbr.rel (%p1058) target = $region56
      $region55: #{voxel_nca_forward.1} parent=51 // pred_region
        %s1061 = smul.u32 4, %s25
      $region56: #{voxel_nca_forward.1} parent=51 // pred_fallthru
        _
    $region52: #{voxel_nca_forward.1} parent=5 // pred_fallthru
      _
    %p1062 = scmp.le.s32.totalorder 2, %s15
    // Predicated region
    $region57: #{voxel_nca_forward.1} parent=5 // pred_check
      %p1063 = pneg %p1062
    $region58: #{voxel_nca_forward.1} parent=5 // pred_check_branch
      %1065 = sbr.rel (%p1063) target = $region60
    $region59: #{voxel_nca_forward.1} parent=5 // pred_region
      %s1066 = ssub.s32 %s15, 2
      // Predicated region
      $region61: #{voxel_nca_forward.1} parent=59 // pred_check
        %p1067 = pneg %p247
      $region62: #{voxel_nca_forward.1} parent=59 // pred_check_branch
        %1069 = sbr.rel (%p1067) target = $region64
      $region63: #{voxel_nca_forward.1} parent=59 // pred_region
        %s1070 = smul.u32 4, %s27
        %p1071 = scmp.lt.s32.totalorder %s26, 1
        %s1072 = scalar_select %p1071, %s26, 1
        %p1073 = scmp.lt.s32.totalorder %s1070, 3
        %s1074 = scalar_select %p1073, %s1070, 3
        %s1075 = smul.addr %s1072, 8
        %s1076 = sadd.s32 %s1074, %s1075
        %s1077 = smul.addr %s1076, 8
        %s1078 = scalar_lea.vmem %s8, %s1077
      $region64: #{voxel_nca_forward.1} parent=59 // pred_fallthru
        _
    $region60: #{voxel_nca_forward.1} parent=5 // pred_fallthru
      _
  $region6: #{voxel_nca_forward.1} parent=0 // loop_footer
    %s19 = sadd.s32 1, %s15
  $region7: #{voxel_nca_forward.1} parent=0 // loop_footer_branch
    %14 = sbr.rel target = $region3
  $region8: #{voxel_nca_forward.1} parent=0 // loop_exit
    _

</llo_original>
